<compile_context>
chip_gen: v5e
topology: v5e:2x2
jax: 0.10.0
libtpu: 0.0.40
codegen_flags: <defaults>
</compile_context>

<pallas_src>
import functools

import jax
import jax.numpy as jnp
from jax.experimental import pallas as pl
from jax.experimental.pallas import tpu as pltpu


def _vq_kernel(x_ref, e_kd_ref, e2_ref,        # inputs
               q_ref, cnt_ref,                  # outputs
               cnt_acc,                         # VMEM scratch accumulator
               *, use_mxu_scores: bool, use_mxu_quant: bool):
    # x_ref   : (Bb, D, tn)  pixel tile (channels in sublanes, pixels in lanes)
    # e_kd_ref: (K, D)       codebook (resident across the grid)
    # e2_ref  : (K, 1)       ||e_k||^2 (precomputed in the wrapper)
    # q_ref   : (Bb, D, tn)  quantized pixel tile
    # cnt_ref : (1, K, 1)    per-batch-block code-usage counts (written at last tile)
    # cnt_acc : (K, tn)      lane-dense counts accumulator (XLU reduce only at flush)
    t = pl.program_id(1)

    @pl.when(t == 0)
    def _init():
        cnt_acc[...] = jnp.zeros_like(cnt_acc)

    x = x_ref[...].astype(jnp.float32)               # (Bb, D, tn)
    e_kd = e_kd_ref[...].astype(jnp.float32)         # (K, D)
    e2 = e2_ref[...]                                 # (K, 1)
    Bb, D, tn = x.shape
    K = e_kd.shape[0]

    # scores[b, k, n] = <x[b, :, n], e_k>
    if use_mxu_scores:
        scores = jnp.stack(
            [jnp.dot(e_kd, x[b], preferred_element_type=jnp.float32)
             for b in range(Bb)], axis=0)                                     # (Bb, K, tn)
    else:
        # tiny contraction (D=4): pure-VPU multiply-add, unrolled over D
        scores = e_kd[:, 0:1].reshape(1, K, 1) * x[:, 0:1, :]
        for d in range(1, D):
            scores = scores + e_kd[:, d:d + 1].reshape(1, K, 1) * x[:, d:d + 1, :]

    # argmin_k ||x - e_k||^2 == argmin_k (||e_k||^2 - 2 <x, e_k>); the ||x||^2
    # term is constant per pixel so it is dropped.
    d2 = e2.reshape(1, K, 1) - 2.0 * scores                                    # (Bb, K, tn)
    minval = jnp.min(d2, axis=1, keepdims=True)                                # (Bb, 1, tn)
    code = jax.lax.broadcasted_iota(jnp.int32, (Bb, K, tn), 1)
    # first-occurrence tie-break (matches torch/jnp argmin)
    idx = jnp.min(jnp.where(d2 == minval, code, K), axis=1, keepdims=True)     # (Bb, 1, tn)
    onehot = (code == idx).astype(jnp.float32)                                 # (Bb, K, tn)

    # quantized[b, d, n] = embedding[idx[b, n], d]
    if use_mxu_quant:
        q = jnp.stack(
            [jnp.dot(e_kd.T, onehot[b], preferred_element_type=jnp.float32)
             for b in range(Bb)], axis=0)                                      # (Bb, D, tn)
    else:
        # D-loop restructure: per output row, one VPU mul against the lane-broadcast
        # codebook column and one sublane reduce over K (D << K ops vs the old K-loop).
        rows = []
        for d in range(D):
            w = onehot * e_kd[:, d:d + 1].reshape(1, K, 1)                     # VPU mul
            rows.append(jnp.sum(w, axis=1, keepdims=True))                     # (Bb, 1, tn)
        q = jnp.concatenate(rows, axis=1)                                      # (Bb, D, tn)

    q_ref[...] = q.astype(q_ref.dtype)

    # Lane-dense counts accumulation: the leading-axis (batch) fold is plain VPU
    # adds; the cross-lane (XLU) reduction is deferred to the once-per-batch flush.
    cnt_acc[...] += jnp.sum(onehot, axis=0)                                    # (K, tn)

    @pl.when(t == pl.num_programs(1) - 1)
    def _flush():
        cnt_ref[0] = jnp.sum(cnt_acc[...], axis=1, keepdims=True)              # (K, 1)


def _choose_tiling(B: int, HW: int, target_pixels: int = 16384):
    """Pick (batch block Bb, lane tile tn) so each grid step covers ~target_pixels.

    Per-grid-step fixed overhead is ~0.35 us; with D=4 f32 the double-buffered
    in+out working set is ~64 B per lane, so even 16K lanes per step is only a
    few MiB of VMEM — safe on every generation including v7x (64 MiB physical).
    """
    if HW <= target_pixels:
        tn = HW                               # full extent is always a legal block dim
    else:
        tn = (target_pixels // 128) * 128
        while tn >= 128 and HW % tn != 0:
            tn -= 128
        if tn < 128:
            tn = HW                           # fallback: single full-width tile
    bb = max(1, min(B, target_pixels // max(tn, 1)))
    while B % bb != 0:
        bb -= 1
    return bb, tn


@functools.partial(jax.jit, static_argnames=("commitment_cost",))
def vq_ema_forward(x, embedding, *, commitment_cost=0.25):
    """Forward pass of VectorQuantizerEMA.

    x         : (B, C, H, W) float32, NCHW (PyTorch conv layout), C == embedding_dim
    embedding : (num_embeddings, embedding_dim) float32 codebook
    returns   : (quantized (B, C, H, W), loss scalar, perplexity scalar)
    """
    B, C, H, W = x.shape
    K, D = embedding.shape
    assert C == D, "channel dim must equal embedding_dim"
    HW = H * W
    N = B * HW

    Bb, tn = _choose_tiling(B, HW)
    nb = B // Bb
    nt = HW // tn

    # NCHW viewed as (B, D, H*W) is already lane-dense: no transpose needed.
    # stop_gradient on the kernel inputs: the VQ op itself carries no gradient
    # (straight-through + detached commitment target), so jax.grad never needs
    # a pallas_call VJP.
    xr = jax.lax.stop_gradient(x.reshape(B, D, HW))

    # Hoist codebook-derived quantities out of the per-step body.
    e_kd = jax.lax.stop_gradient(embedding.astype(jnp.float32))        # (K, D)
    e2 = jnp.sum(e_kd * e_kd, axis=1, keepdims=True)                   # (K, 1)

    # MXU routing per contraction (geometry-aware): scores pay off once K reaches
    # MXU rows; the one-hot quantize stays on the VPU unless D is MXU-sized.
    use_mxu_scores = K >= 128
    use_mxu_quant = D >= 128
    kernel = functools.partial(_vq_kernel, use_mxu_scores=use_mxu_scores,
                               use_mxu_quant=use_mxu_quant)

    # VMEM budget guardrail (v7x: 64 MiB physical per TC): double-buffered x/q
    # tiles + resident codebook + counts scratch + f32 temporaries + headroom.
    itemsize = jnp.dtype(x.dtype).itemsize
    tile_io = Bb * D * tn * itemsize
    est = (4 * tile_io                       # 2x double-buffered input + output tiles
           + 6 * Bb * K * tn * 4             # f32 temporaries (scores/d2/code/onehot/...)
           + K * tn * 4                      # counts scratch
           + K * (D + 1) * 4                 # resident codebook + norms
           + (4 << 20))                      # headroom
    vmem_limit = int(min(max(est, 16 * 1024 * 1024), 40 * 1024 * 1024))

    q_r, cnt_b = pl.pallas_call(
        kernel,
        out_shape=(
            jax.ShapeDtypeStruct((B, D, HW), x.dtype),        # quantized
            jax.ShapeDtypeStruct((nb, K, 1), jnp.float32),    # per-batch-block counts
        ),
        grid_spec=pltpu.PrefetchScalarGridSpec(
            num_scalar_prefetch=0,
            grid=(nb, nt),
            in_specs=[
                pl.BlockSpec((Bb, D, tn), lambda b, t: (b, 0, t)),   # pixel tiles
                pl.BlockSpec((K, D), lambda b, t: (0, 0)),           # codebook (resident)
                pl.BlockSpec((K, 1), lambda b, t: (0, 0)),           # ||e||^2 (resident)
            ],
            out_specs=[
                pl.BlockSpec((Bb, D, tn), lambda b, t: (b, 0, t)),   # quantized tiles
                pl.BlockSpec((1, K, 1), lambda b, t: (b, 0, 0)),     # counts (write-once)
            ],
            scratch_shapes=[
                pltpu.VMEM((K, tn), jnp.float32),    # lane-dense counts accumulator
            ],
        ),
        compiler_params=pltpu.CompilerParams(
            # batch-block axis parallel (megacore), pixel-tile axis sequential
            # (scratch accumulator with last-tile flush).
            dimension_semantics=("parallel", "arbitrary"),
            vmem_limit_bytes=vmem_limit,
        ),
        cost_estimate=pl.CostEstimate(
            flops=4 * N * K * D,
            transcendentals=0,
            bytes_accessed=(2 * N * D + K * D + K) * 4,
        ),
    )(xr, e_kd, e2)

    quantized = q_r.reshape(B, D, H, W)                        # already NCHW

    counts = jnp.sum(cnt_b, axis=0)[:, 0]                      # (K,)
    avg_probs = counts / jnp.float32(N)                        # encodings.mean(0)
    perplexity = jnp.exp(-jnp.sum(avg_probs * jnp.log(avg_probs + 1e-10)))

    # commitment loss recomputed in the wrapper from the returned quantized so the
    # encoder gradient flows through x: commitment_cost * mse(x, quantized.detach()).
    q_sg = jax.lax.stop_gradient(quantized)
    loss = jnp.float32(commitment_cost) * jnp.mean(jnp.square(x - q_sg))

    # straight-through estimator: x + (quantized - x).detach()
    quantized_st = x + jax.lax.stop_gradient(quantized - x)
    return quantized_st, loss, perplexity


def _reference(x, embedding, commitment_cost):
    """Pure-JAX reference reproducing the PyTorch forward."""
    B, C, H, W = x.shape
    K, D = embedding.shape
    flat = jnp.transpose(x, (0, 2, 3, 1)).reshape(-1, D)
    d2 = (jnp.sum(flat**2, -1, keepdims=True)
          - 2.0 * flat @ embedding.T
          + jnp.sum(embedding**2, -1)[None, :])
    idx = jnp.argmin(d2, axis=1)
    enc = jax.nn.one_hot(idx, K, dtype=flat.dtype)
    q = (enc @ embedding).reshape(B, H, W, D)
    q = jnp.transpose(q, (0, 3, 1, 2))
    loss = commitment_cost * jnp.mean((x - q) ** 2)
    avg = enc.mean(0)
    perp = jnp.exp(-jnp.sum(avg * jnp.log(avg + 1e-10)))
    return q, loss, perp


if __name__ == "__main__":
    # Module config (synthetic, deterministic init).
    num_embeddings = 16
    embedding_dim = 4
    commitment_cost = 0.25

    key = jax.random.PRNGKey(0)
    k_emb, k_x = jax.random.split(key)

    # embed = F.normalize(0.1 * randn(K, D), dim=1)
    embed = 0.1 * jax.random.normal(k_emb, (num_embeddings, embedding_dim),
                                    dtype=jnp.float32)
    embed = embed / jnp.maximum(
        jnp.linalg.norm(embed, axis=1, keepdims=True), 1e-12)

    # input: NCHW, channels == embedding_dim
    x = jax.random.normal(k_x, (2, embedding_dim, 16, 16), dtype=jnp.float32)

    quantized, loss, perplexity = vq_ema_forward(
        x, embed, commitment_cost=commitment_cost)
    jax.block_until_ready((quantized, loss, perplexity))

    # Sanity check against pure-JAX reference.
    q_ref, loss_ref, perp_ref = _reference(x, embed, commitment_cost)
    assert jnp.allclose(quantized, q_ref, atol=1e-5, rtol=1e-5)
    assert jnp.allclose(loss, loss_ref, atol=1e-6, rtol=1e-5)
    assert jnp.allclose(perplexity, perp_ref, atol=1e-4, rtol=1e-4)

    print("KERNEL_OK")
</pallas_src>

<mosaic_0001>
module attributes {stable_mosaic.version = 11 : i64} {
  func.func @_vq_kernel(%arg0: i32, %arg1: i32, %arg2: memref<2x4x256xf32, #tpu.memory_space<vmem>>, %arg3: memref<16x4xf32, #tpu.memory_space<vmem>>, %arg4: memref<16x1xf32, #tpu.memory_space<vmem>>, %arg5: memref<2x4x256xf32, #tpu.memory_space<vmem>>, %arg6: memref<1x16x1xf32, #tpu.memory_space<vmem>>, %arg7: memref<16x256xf32, #tpu.memory_space<vmem>>) attributes {dimension_semantics = [#tpu.dimension_semantics<parallel>, #tpu.dimension_semantics<arbitrary>], iteration_bounds = array<i64: 1, 1>, scalar_prefetch = 0 : i64, scratch_operands = 1 : i64, tpu.core_type = #tpu.core_type<tc>, window_params = [{transform_indices = @transform_0, window_bounds = array<i64: 2, 4, 256>}, {pipeline_mode = #tpu.pipeline_mode<synchronous>, transform_indices = @transform_1, window_bounds = array<i64: 16, 4>}, {pipeline_mode = #tpu.pipeline_mode<synchronous>, transform_indices = @transform_2, window_bounds = array<i64: 16, 1>}, {transform_indices = @transform_3, window_bounds = array<i64: 2, 4, 256>}, {transform_indices = @transform_4, window_bounds = array<i64: 1, 16, 1>}]} {
    %c0_i32 = arith.constant 0 : i32
    %0 = arith.cmpi eq, %arg1, %c0_i32 : i32
    %1 = arith.extui %0 : i1 to i32
    %c0_i32_0 = arith.constant 0 : i32
    %2 = arith.cmpi ne, %1, %c0_i32_0 : i32
    scf.if %2 {
      %cst_23 = arith.constant 0.000000e+00 : f32
      %84 = vector.broadcast %cst_23 : f32 to vector<16x256xf32>
      %c0_24 = arith.constant 0 : index
      %c0_25 = arith.constant 0 : index
      %85 = vector.load %arg7[%c0_24, %c0_25] : memref<16x256xf32, #tpu.memory_space<vmem>>, vector<16x256xf32>
      tpu.vector_store %arg7[%c0_24, %c0_25], %84 {strides = array<i32>} : memref<16x256xf32, #tpu.memory_space<vmem>>, vector<16x256xf32>,
    } else {
    }
    %c0 = arith.constant 0 : index
    %c0_1 = arith.constant 0 : index
    %c0_2 = arith.constant 0 : index
    %3 = vector.load %arg2[%c0, %c0_1, %c0_2] : memref<2x4x256xf32, #tpu.memory_space<vmem>>, vector<2x4x256xf32>
    %c0_3 = arith.constant 0 : index
    %c0_4 = arith.constant 0 : index
    %4 = vector.load %arg3[%c0_3, %c0_4] : memref<16x4xf32, #tpu.memory_space<vmem>>, vector<16x4xf32>
    %c0_5 = arith.constant 0 : index
    %c0_6 = arith.constant 0 : index
    %5 = vector.load %arg4[%c0_5, %c0_6] : memref<16x1xf32, #tpu.memory_space<vmem>>, vector<16x1xf32>
    %6 = vector.extract_strided_slice %4 {offsets = [0, 0], sizes = [16, 1], strides = [1, 1]} : vector<16x4xf32> to vector<16x1xf32>
    %7 = vector.shape_cast %6 : vector<16x1xf32> to vector<1x16x1xf32>
    %8 = vector.extract_strided_slice %3 {offsets = [0, 0, 0], sizes = [2, 1, 256], strides = [1, 1, 1]} : vector<2x4x256xf32> to vector<2x1x256xf32>
    %9 = vector.broadcast %7 : vector<1x16x1xf32> to vector<2x16x256xf32>
    %10 = vector.broadcast %8 : vector<2x1x256xf32> to vector<2x16x256xf32>
    %11 = arith.mulf %9, %10 : vector<2x16x256xf32>
    %12 = vector.extract_strided_slice %4 {offsets = [0, 1], sizes = [16, 1], strides = [1, 1]} : vector<16x4xf32> to vector<16x1xf32>
    %13 = vector.shape_cast %12 : vector<16x1xf32> to vector<1x16x1xf32>
    %14 = vector.extract_strided_slice %3 {offsets = [0, 1, 0], sizes = [2, 1, 256], strides = [1, 1, 1]} : vector<2x4x256xf32> to vector<2x1x256xf32>
    %15 = vector.broadcast %13 : vector<1x16x1xf32> to vector<2x16x256xf32>
    %16 = vector.broadcast %14 : vector<2x1x256xf32> to vector<2x16x256xf32>
    %17 = arith.mulf %15, %16 : vector<2x16x256xf32>
    %18 = arith.addf %11, %17 : vector<2x16x256xf32>
    %19 = vector.extract_strided_slice %4 {offsets = [0, 2], sizes = [16, 1], strides = [1, 1]} : vector<16x4xf32> to vector<16x1xf32>
    %20 = vector.shape_cast %19 : vector<16x1xf32> to vector<1x16x1xf32>
    %21 = vector.extract_strided_slice %3 {offsets = [0, 2, 0], sizes = [2, 1, 256], strides = [1, 1, 1]} : vector<2x4x256xf32> to vector<2x1x256xf32>
    %22 = vector.broadcast %20 : vector<1x16x1xf32> to vector<2x16x256xf32>
    %23 = vector.broadcast %21 : vector<2x1x256xf32> to vector<2x16x256xf32>
    %24 = arith.mulf %22, %23 : vector<2x16x256xf32>
    %25 = arith.addf %18, %24 : vector<2x16x256xf32>
    %26 = vector.extract_strided_slice %4 {offsets = [0, 3], sizes = [16, 1], strides = [1, 1]} : vector<16x4xf32> to vector<16x1xf32>
    %27 = vector.shape_cast %26 : vector<16x1xf32> to vector<1x16x1xf32>
    %28 = vector.extract_strided_slice %3 {offsets = [0, 3, 0], sizes = [2, 1, 256], strides = [1, 1, 1]} : vector<2x4x256xf32> to vector<2x1x256xf32>
    %29 = vector.broadcast %27 : vector<1x16x1xf32> to vector<2x16x256xf32>
    %30 = vector.broadcast %28 : vector<2x1x256xf32> to vector<2x16x256xf32>
    %31 = arith.mulf %29, %30 : vector<2x16x256xf32>
    %32 = arith.addf %25, %31 : vector<2x16x256xf32>
    %33 = vector.shape_cast %5 : vector<16x1xf32> to vector<1x16x1xf32>
    %cst = arith.constant 2.000000e+00 : f32
    %34 = vector.broadcast %cst : f32 to vector<2x16x256xf32>
    %35 = arith.mulf %34, %32 : vector<2x16x256xf32>
    %36 = vector.broadcast %33 : vector<1x16x1xf32> to vector<2x16x256xf32>
    %37 = arith.subf %36, %35 : vector<2x16x256xf32>
    %cst_7 = arith.constant dense<0x7F800000> : vector<2x256xf32>
    %38 = vector.multi_reduction <minimumf>, %37, %cst_7 [1] : vector<2x16x256xf32> to vector<2x256xf32>
    %39 = vector.shape_cast %38 : vector<2x256xf32> to vector<2x1x256xf32>
    %40 = tpu.iota {dimensions = array<i32: 1>} : vector<2x16x256xi32>
    %41 = vector.broadcast %39 : vector<2x1x256xf32> to vector<2x16x256xf32>
    %42 = arith.cmpf oeq, %37, %41 : vector<2x16x256xf32>
    %c16_i32 = arith.constant 16 : i32
    %43 = vector.broadcast %c16_i32 : i32 to vector<2x16x256xi32>
    %44 = arith.select %42, %40, %43 : vector<2x16x256xi1>, vector<2x16x256xi32>
    %cst_8 = arith.constant dense<2147483647> : vector<2x256xi32>
    %45 = vector.multi_reduction <minsi>, %44, %cst_8 [1] : vector<2x16x256xi32> to vector<2x256xi32>
    %46 = vector.shape_cast %45 : vector<2x256xi32> to vector<2x1x256xi32>
    %47 = vector.broadcast %46 : vector<2x1x256xi32> to vector<2x16x256xi32>
    %48 = arith.cmpi eq, %40, %47 : vector<2x16x256xi32>
    %49 = arith.extui %48 : vector<2x16x256xi1> to vector<2x16x256xi32>
    %50 = arith.sitofp %49 : vector<2x16x256xi32> to vector<2x16x256xf32>
    %51 = vector.extract_strided_slice %4 {offsets = [0, 0], sizes = [16, 1], strides = [1, 1]} : vector<16x4xf32> to vector<16x1xf32>
    %52 = vector.shape_cast %51 : vector<16x1xf32> to vector<1x16x1xf32>
    %53 = vector.broadcast %52 : vector<1x16x1xf32> to vector<2x16x256xf32>
    %54 = arith.mulf %50, %53 : vector<2x16x256xf32>
    %cst_9 = arith.constant dense<0.000000e+00> : vector<2x256xf32>
    %55 = vector.multi_reduction <add>, %54, %cst_9 [1] : vector<2x16x256xf32> to vector<2x256xf32>
    %56 = vector.shape_cast %55 : vector<2x256xf32> to vector<2x1x256xf32>
    %57 = vector.extract_strided_slice %4 {offsets = [0, 1], sizes = [16, 1], strides = [1, 1]} : vector<16x4xf32> to vector<16x1xf32>
    %58 = vector.shape_cast %57 : vector<16x1xf32> to vector<1x16x1xf32>
    %59 = vector.broadcast %58 : vector<1x16x1xf32> to vector<2x16x256xf32>
    %60 = arith.mulf %50, %59 : vector<2x16x256xf32>
    %cst_10 = arith.constant dense<0.000000e+00> : vector<2x256xf32>
    %61 = vector.multi_reduction <add>, %60, %cst_10 [1] : vector<2x16x256xf32> to vector<2x256xf32>
    %62 = vector.shape_cast %61 : vector<2x256xf32> to vector<2x1x256xf32>
    %63 = vector.extract_strided_slice %4 {offsets = [0, 2], sizes = [16, 1], strides = [1, 1]} : vector<16x4xf32> to vector<16x1xf32>
    %64 = vector.shape_cast %63 : vector<16x1xf32> to vector<1x16x1xf32>
    %65 = vector.broadcast %64 : vector<1x16x1xf32> to vector<2x16x256xf32>
    %66 = arith.mulf %50, %65 : vector<2x16x256xf32>
    %cst_11 = arith.constant dense<0.000000e+00> : vector<2x256xf32>
    %67 = vector.multi_reduction <add>, %66, %cst_11 [1] : vector<2x16x256xf32> to vector<2x256xf32>
    %68 = vector.shape_cast %67 : vector<2x256xf32> to vector<2x1x256xf32>
    %69 = vector.extract_strided_slice %4 {offsets = [0, 3], sizes = [16, 1], strides = [1, 1]} : vector<16x4xf32> to vector<16x1xf32>
    %70 = vector.shape_cast %69 : vector<16x1xf32> to vector<1x16x1xf32>
    %71 = vector.broadcast %70 : vector<1x16x1xf32> to vector<2x16x256xf32>
    %72 = arith.mulf %50, %71 : vector<2x16x256xf32>
    %cst_12 = arith.constant dense<0.000000e+00> : vector<2x256xf32>
    %73 = vector.multi_reduction <add>, %72, %cst_12 [1] : vector<2x16x256xf32> to vector<2x256xf32>
    %74 = vector.shape_cast %73 : vector<2x256xf32> to vector<2x1x256xf32>
    %75 = tpu.concatenate %56, %62, %68, %74 in 1 : vector<2x1x256xf32>, vector<2x1x256xf32>, vector<2x1x256xf32>, vector<2x1x256xf32> -> vector<2x4x256xf32>
    %c0_13 = arith.constant 0 : index
    %c0_14 = arith.constant 0 : index
    %c0_15 = arith.constant 0 : index
    %76 = vector.load %arg5[%c0_13, %c0_14, %c0_15] : memref<2x4x256xf32, #tpu.memory_space<vmem>>, vector<2x4x256xf32>
    tpu.vector_store %arg5[%c0_13, %c0_14, %c0_15], %75 {strides = array<i32>} : memref<2x4x256xf32, #tpu.memory_space<vmem>>, vector<2x4x256xf32>,
    %c0_16 = arith.constant 0 : index
    %c0_17 = arith.constant 0 : index
    %77 = vector.load %arg7[%c0_16, %c0_17] : memref<16x256xf32, #tpu.memory_space<vmem>>, vector<16x256xf32>
    %cst_18 = arith.constant dense<0.000000e+00> : vector<16x256xf32>
    %78 = vector.multi_reduction <add>, %50, %cst_18 [0] : vector<2x16x256xf32> to vector<16x256xf32>
    %79 = arith.addf %77, %78 : vector<16x256xf32>
    %c0_19 = arith.constant 0 : index
    %c0_20 = arith.constant 0 : index
    %80 = vector.load %arg7[%c0_19, %c0_20] : memref<16x256xf32, #tpu.memory_space<vmem>>, vector<16x256xf32>
    tpu.vector_store %arg7[%c0_19, %c0_20], %79 {strides = array<i32>} : memref<16x256xf32, #tpu.memory_space<vmem>>, vector<16x256xf32>,
    %c0_i32_21 = arith.constant 0 : i32
    %81 = arith.cmpi eq, %arg1, %c0_i32_21 : i32
    %82 = arith.extui %81 : i1 to i32
    %c0_i32_22 = arith.constant 0 : i32
    %83 = arith.cmpi ne, %82, %c0_i32_22 : i32
    scf.if %83 {
      %c0_23 = arith.constant 0 : index
      %c0_24 = arith.constant 0 : index
      %84 = vector.load %arg7[%c0_23, %c0_24] : memref<16x256xf32, #tpu.memory_space<vmem>>, vector<16x256xf32>
      %cst_25 = arith.constant dense<0.000000e+00> : vector<16xf32>
      %85 = vector.multi_reduction <add>, %84, %cst_25 [1] : vector<16x256xf32> to vector<16xf32>
      %86 = vector.shape_cast %85 : vector<16xf32> to vector<16x1xf32>
      %c0_26 = arith.constant 0 : index
      %c0_27 = arith.constant 0 : index
      %c0_28 = arith.constant 0 : index
      %87 = vector.load %arg6[%c0_26, %c0_27, %c0_28] : memref<1x16x1xf32, #tpu.memory_space<vmem>>, vector<1x16x1xf32>
      %88 = vector.shape_cast %87 : vector<1x16x1xf32> to vector<16x1xf32>
      %89 = vector.shape_cast %86 : vector<16x1xf32> to vector<1x16x1xf32>
      tpu.vector_store %arg6[%c0_26, %c0_27, %c0_28], %89 {strides = array<i32>} : memref<1x16x1xf32, #tpu.memory_space<vmem>>, vector<1x16x1xf32>,
    } else {
    }
    return
  }
  func.func @transform_0(%arg0: i32, %arg1: i32) -> (i32, i32, i32) {
    %c0_i32 = arith.constant 0 : i32
    %c0_i32_0 = arith.constant 0 : i32
    return %arg0, %c0_i32, %arg1 : i32, i32, i32
  }
  func.func @transform_1(%arg0: i32, %arg1: i32) -> (i32, i32) {
    %c0_i32 = arith.constant 0 : i32
    %c0_i32_0 = arith.constant 0 : i32
    %c0_i32_1 = arith.constant 0 : i32
    return %c0_i32, %c0_i32_0 : i32, i32
  }
  func.func @transform_2(%arg0: i32, %arg1: i32) -> (i32, i32) {
    %c0_i32 = arith.constant 0 : i32
    %c0_i32_0 = arith.constant 0 : i32
    %c0_i32_1 = arith.constant 0 : i32
    return %c0_i32, %c0_i32_0 : i32, i32
  }
  func.func @transform_3(%arg0: i32, %arg1: i32) -> (i32, i32, i32) {
    %c0_i32 = arith.constant 0 : i32
    %c0_i32_0 = arith.constant 0 : i32
    return %arg0, %c0_i32, %arg1 : i32, i32, i32
  }
  func.func @transform_4(%arg0: i32, %arg1: i32) -> (i32, i32, i32) {
    %c0_i32 = arith.constant 0 : i32
    %c0_i32_0 = arith.constant 0 : i32
    %c0_i32_1 = arith.constant 0 : i32
    return %arg0, %c0_i32, %c0_i32_0 : i32, i32, i32
  }
}

</mosaic_0001>

<llo_original>
// kernel: vq_ema_forward.1
$region0: #{vq_ema_forward.1}
  #allocation0 [shape = 'u32[]', space=smem, size = 0x4, offset = 0x4, fixed_abs, tag = 'smem constant byte address 0x4 - core index']
  #allocation1 [shape = 'u32[72,128]{1,0:T(1,128)}', space=vmem, size = 0x9000, scoped, tag = 'internal scratch']
  #allocation2 [shape = 'f32[16,256]{1,0:T(8,128)}', space=vmem, size = 0x4000, scoped, tag = 'scratch operand']
  %s0 = inlined_call_operand.vmem [shape: f32[2,4,256], index: 0, kind: input, shape index: {}]
  %s1 = inlined_call_operand.vmem [shape: f32[16,4], index: 1, kind: input, shape index: {}]
  %s2 = inlined_call_operand.vmem [shape: f32[16,1], index: 2, kind: input, shape index: {}]
  %s3 = inlined_call_operand.vmem [shape: f32[2,4,256], index: 3, kind: output, shape index: {0}]
  %s4 = inlined_call_operand.vmem [shape: f32[1,16,1], index: 4, kind: output, shape index: {1}]
  %5 = xla_tuple %s3, %s4
  %s6 = sld [smem:[#allocation0]]
  $region38: #{vq_ema_forward.1} parent=0
    _
  %s8 = ssub.s32 1, %s6
  %s9 = scalar_select 0, %s8, %s6
  // Predicated region
  $region2: #{vq_ema_forward.1} parent=0 // pred_check
    _
  $region3: #{vq_ema_forward.1} parent=0 // pred_check_branch
    %11 = sbr.rel (0) target = $region5
  $region4: #{vq_ema_forward.1} parent=0 // pred_region
    _
  $region5: #{vq_ema_forward.1} parent=0 // pred_fallthru
    _
  // Predicated region
  $region6: #{vq_ema_forward.1} parent=0 // pred_check
    _
  $region7: #{vq_ema_forward.1} parent=0 // pred_check_branch
    %13 = sbr.rel (0) target = $region9
  $region8: #{vq_ema_forward.1} parent=0 // pred_region
    _
  $region9: #{vq_ema_forward.1} parent=0 // pred_fallthru
    _
  // Predicated region
  $region10: #{vq_ema_forward.1} parent=0 // pred_check
    _
  $region11: #{vq_ema_forward.1} parent=0 // pred_check_branch
    %15 = sbr.rel (0) target = $region13
  $region12: #{vq_ema_forward.1} parent=0 // pred_region
    _
  $region13: #{vq_ema_forward.1} parent=0 // pred_fallthru
    _
  %p16 = scmp.eq.s32.totalorder 0, 0
  // Predicated region
  $region14: #{vq_ema_forward.1} parent=0 // pred_check
    %p17 = pneg %p16
  $region15: #{vq_ema_forward.1} parent=0 // pred_check_branch
    %19 = sbr.rel (%p17) target = $region17
  $region16: #{vq_ema_forward.1} parent=0 // pred_region
    %20 = vst [vmem:[#allocation2] sm:$0xff] 0.0
    %21 = vst [vmem:[#allocation2 + $0x8] sm:$0xff] 0.0
    %22 = vst [vmem:[#allocation2 + $0x10] sm:$0xff] 0.0
    %23 = vst [vmem:[#allocation2 + $0x18] sm:$0xff] 0.0
  $region17: #{vq_ema_forward.1} parent=0 // pred_fallthru
    _
  %v24 = vld [vmem:[%s0] sm:$0xff]
  %v25 = vld [vmem:[%s0 + $0x8] sm:$0xff]
  %v26 = vld [vmem:[%s1] sm:$0xff]
  %v27 = vld [vmem:[%s1 + $0x8] sm:$0xff]
  %v28 = vld [vmem:[%s2] sm:$0xff]
  %v29 = vld [vmem:[%s2 + $0x8] sm:$0xff]
  %31 = vset.pattern.permute.xlu0 0
  %32 = vperm.xlu0 %31, %v26
  %v33 = vpop.permute.xlu0 %32
  %36 = vset.pattern.permute.xlu0 0
  %37 = vperm.xlu0 %36, %v27
  %v38 = vpop.permute.xlu0 %37
  %v42 = vperm.slane %v24, 0
  %v43 = vperm.slane %v24, 4
  %v44 = vperm.slane %v25, 0
  %v45 = vperm.slane %v25, 4
  %v50 = vperm.slane %v42, 0
  %v51 = vperm.slane %v43, 0
  %v52 = vperm.slane %v44, 0
  %v53 = vperm.slane %v45, 0
  %v54 = vmul.f32 %v33, %v50
  %v55 = vmul.f32 %v33, %v51
  %v56 = vmul.f32 %v38, %v50
  %v57 = vmul.f32 %v38, %v51
  %v58 = vmul.f32 %v33, %v52
  %v59 = vmul.f32 %v33, %v53
  %v60 = vmul.f32 %v38, %v52
  %v61 = vmul.f32 %v38, %v53
  %62 = vset.pattern.permute.xlu0 1
  %63 = vperm.xlu0 %62, %v26
  %v64 = vpop.permute.xlu0 %63
  %66 = vset.pattern.permute.xlu0 1
  %67 = vperm.xlu0 %66, %v27
  %v68 = vpop.permute.xlu0 %67
  %v70 = vperm.slane %v24, 1
  %v71 = vperm.slane %v24, 5
  %v72 = vperm.slane %v25, 1
  %v73 = vperm.slane %v25, 5
  %v78 = vperm.slane %v70, 1
  %v79 = vperm.slane %v71, 1
  %v80 = vperm.slane %v72, 1
  %v81 = vperm.slane %v73, 1
  %v82 = vmul.f32 %v64, %v78
  %v83 = vmul.f32 %v64, %v79
  %v84 = vmul.f32 %v68, %v78
  %v85 = vmul.f32 %v68, %v79
  %v86 = vmul.f32 %v64, %v80
  %v87 = vmul.f32 %v64, %v81
  %v88 = vmul.f32 %v68, %v80
  %v89 = vmul.f32 %v68, %v81
  %v90 = vadd.f32 %v54, %v82
  %v91 = vadd.f32 %v55, %v83
  %v92 = vadd.f32 %v56, %v84
  %v93 = vadd.f32 %v57, %v85
  %v94 = vadd.f32 %v58, %v86
  %v95 = vadd.f32 %v59, %v87
  %v96 = vadd.f32 %v60, %v88
  %v97 = vadd.f32 %v61, %v89
  %98 = vset.pattern.permute.xlu0 2
  %99 = vperm.xlu0 %98, %v26
  %v100 = vpop.permute.xlu0 %99
  %102 = vset.pattern.permute.xlu0 2
  %103 = vperm.xlu0 %102, %v27
  %v104 = vpop.permute.xlu0 %103
  %v106 = vperm.slane %v24, 2
  %v107 = vperm.slane %v24, 6
  %v108 = vperm.slane %v25, 2
  %v109 = vperm.slane %v25, 6
  %v114 = vperm.slane %v106, 2
  %v115 = vperm.slane %v107, 2
  %v116 = vperm.slane %v108, 2
  %v117 = vperm.slane %v109, 2
  %v118 = vmul.f32 %v100, %v114
  %v119 = vmul.f32 %v100, %v115
  %v120 = vmul.f32 %v104, %v114
  %v121 = vmul.f32 %v104, %v115
  %v122 = vmul.f32 %v100, %v116
  %v123 = vmul.f32 %v100, %v117
  %v124 = vmul.f32 %v104, %v116
  %v125 = vmul.f32 %v104, %v117
  %v126 = vadd.f32 %v90, %v118
  %v127 = vadd.f32 %v91, %v119
  %v128 = vadd.f32 %v92, %v120
  %v129 = vadd.f32 %v93, %v121
  %v130 = vadd.f32 %v94, %v122
  %v131 = vadd.f32 %v95, %v123
  %v132 = vadd.f32 %v96, %v124
  %v133 = vadd.f32 %v97, %v125
  %134 = vset.pattern.permute.xlu0 3
  %135 = vperm.xlu0 %134, %v26
  %v136 = vpop.permute.xlu0 %135
  %138 = vset.pattern.permute.xlu0 3
  %139 = vperm.xlu0 %138, %v27
  %v140 = vpop.permute.xlu0 %139
  %v142 = vperm.slane %v24, 3
  %v143 = vperm.slane %v24, 7
  %v144 = vperm.slane %v25, 3
  %v145 = vperm.slane %v25, 7
  %v150 = vperm.slane %v142, 3
  %v151 = vperm.slane %v143, 3
  %v152 = vperm.slane %v144, 3
  %v153 = vperm.slane %v145, 3
  %v154 = vmul.f32 %v136, %v150
  %v155 = vmul.f32 %v136, %v151
  %v156 = vmul.f32 %v140, %v150
  %v157 = vmul.f32 %v140, %v151
  %v158 = vmul.f32 %v136, %v152
  %v159 = vmul.f32 %v136, %v153
  %v160 = vmul.f32 %v140, %v152
  %v161 = vmul.f32 %v140, %v153
  %v162 = vadd.f32 %v126, %v154
  %v163 = vadd.f32 %v127, %v155
  %v164 = vadd.f32 %v128, %v156
  %v165 = vadd.f32 %v129, %v157
  %v166 = vadd.f32 %v130, %v158
  %v167 = vadd.f32 %v131, %v159
  %v168 = vadd.f32 %v132, %v160
  %v169 = vadd.f32 %v133, %v161
  %v170 = vmul.f32 %v162, 2.0
  %v171 = vmul.f32 %v163, 2.0
  %v172 = vmul.f32 %v164, 2.0
  %v173 = vmul.f32 %v165, 2.0
  %v174 = vmul.f32 %v166, 2.0
  %v175 = vmul.f32 %v167, 2.0
  %v176 = vmul.f32 %v168, 2.0
  %v177 = vmul.f32 %v169, 2.0
  %179 = vset.pattern.permute.xlu0 0
  %180 = vperm.xlu0 %179, %v28
  %v181 = vpop.permute.xlu0 %180
  %184 = vset.pattern.permute.xlu0 0
  %185 = vperm.xlu0 %184, %v29
  %v186 = vpop.permute.xlu0 %185
  %v188 = vsub.f32 %v181, %v170
  %v189 = vsub.f32 %v181, %v171
  %v190 = vsub.f32 %v186, %v172
  %v191 = vsub.f32 %v186, %v173
  %v192 = vsub.f32 %v181, %v174
  %v193 = vsub.f32 %v181, %v175
  %v194 = vsub.f32 %v186, %v176
  %v195 = vsub.f32 %v186, %v177
  %v196 = vmin.f32 %v188, %v190
  %v197 = vrot.slane %v196, 4
  %v198 = vmin.f32 %v196, %v197
  %v199 = vrot.slane %v198, 2
  %v200 = vmin.f32 %v198, %v199
  %v201 = vrot.slane %v200, 1
  %v202 = vmin.f32 %v200, %v201
  %v203 = vmin.f32 %v189, %v191
  %v204 = vrot.slane %v203, 4
  %v205 = vmin.f32 %v203, %v204
  %v206 = vrot.slane %v205, 2
  %v207 = vmin.f32 %v205, %v206
  %v208 = vrot.slane %v207, 1
  %v209 = vmin.f32 %v207, %v208
  %v210 = vmin.f32 %v192, %v194
  %v211 = vrot.slane %v210, 4
  %v212 = vmin.f32 %v210, %v211
  %v213 = vrot.slane %v212, 2
  %v214 = vmin.f32 %v212, %v213
  %v215 = vrot.slane %v214, 1
  %v216 = vmin.f32 %v214, %v215
  %v217 = vmin.f32 %v193, %v195
  %v218 = vrot.slane %v217, 4
  %v219 = vmin.f32 %v217, %v218
  %v220 = vrot.slane %v219, 2
  %v221 = vmin.f32 %v219, %v220
  %v222 = vrot.slane %v221, 1
  %v223 = vmin.f32 %v221, %v222
  %v224 = vlaneseq
  %v225 = vshrl.u32 %v224, 7
  %v226 = vadd.s32 %v225, 8
  %vm227 = vcmp.eq.f32.partialorder %v188, %v202
  %vm228 = vcmp.eq.f32.partialorder %v189, %v209
  %vm229 = vcmp.eq.f32.partialorder %v190, %v202
  %vm230 = vcmp.eq.f32.partialorder %v191, %v209
  %vm231 = vcmp.eq.f32.partialorder %v192, %v216
  %vm232 = vcmp.eq.f32.partialorder %v193, %v223
  %vm233 = vcmp.eq.f32.partialorder %v194, %v216
  %vm234 = vcmp.eq.f32.partialorder %v195, %v223
  %v235 = vsel %vm227, %v225, 16
  %v236 = vsel %vm228, %v225, 16
  %v237 = vsel %vm229, %v226, 16
  %v238 = vsel %vm230, %v226, 16
  %v239 = vsel %vm231, %v225, 16
  %v240 = vsel %vm232, %v225, 16
  %v241 = vsel %vm233, %v226, 16
  %v242 = vsel %vm234, %v226, 16
  %vm243 = vcmp.lt.s32.totalorder %v235, %v237
  %v244 = vsel %vm243, %v235, %v237
  %v245 = vrot.slane %v244, 4
  %vm246 = vcmp.lt.s32.totalorder %v244, %v245
  %v247 = vsel %vm246, %v244, %v245
  %v248 = vrot.slane %v247, 2
  %vm249 = vcmp.lt.s32.totalorder %v247, %v248
  %v250 = vsel %vm249, %v247, %v248
  %v251 = vrot.slane %v250, 1
  %vm252 = vcmp.lt.s32.totalorder %v250, %v251
  %v253 = vsel %vm252, %v250, %v251
  %vm254 = vcmp.lt.s32.totalorder %v236, %v238
  %v255 = vsel %vm254, %v236, %v238
  %v256 = vrot.slane %v255, 4
  %vm257 = vcmp.lt.s32.totalorder %v255, %v256
  %v258 = vsel %vm257, %v255, %v256
  %v259 = vrot.slane %v258, 2
  %vm260 = vcmp.lt.s32.totalorder %v258, %v259
  %v261 = vsel %vm260, %v258, %v259
  %v262 = vrot.slane %v261, 1
  %vm263 = vcmp.lt.s32.totalorder %v261, %v262
  %v264 = vsel %vm263, %v261, %v262
  %vm265 = vcmp.lt.s32.totalorder %v239, %v241
  %v266 = vsel %vm265, %v239, %v241
  %v267 = vrot.slane %v266, 4
  %vm268 = vcmp.lt.s32.totalorder %v266, %v267
  %v269 = vsel %vm268, %v266, %v267
  %v270 = vrot.slane %v269, 2
  %vm271 = vcmp.lt.s32.totalorder %v269, %v270
  %v272 = vsel %vm271, %v269, %v270
  %v273 = vrot.slane %v272, 1
  %vm274 = vcmp.lt.s32.totalorder %v272, %v273
  %v275 = vsel %vm274, %v272, %v273
  %vm276 = vcmp.lt.s32.totalorder %v240, %v242
  %v277 = vsel %vm276, %v240, %v242
  %v278 = vrot.slane %v277, 4
  %vm279 = vcmp.lt.s32.totalorder %v277, %v278
  %v280 = vsel %vm279, %v277, %v278
  %v281 = vrot.slane %v280, 2
  %vm282 = vcmp.lt.s32.totalorder %v280, %v281
  %v283 = vsel %vm282, %v280, %v281
  %v284 = vrot.slane %v283, 1
  %vm285 = vcmp.lt.s32.totalorder %v283, %v284
  %v286 = vsel %vm285, %v283, %v284
  %vm287 = vcmp.eq.s32.totalorder %v225, %v253
  %vm288 = vcmp.eq.s32.totalorder %v225, %v264
  %vm289 = vcmp.eq.s32.totalorder %v226, %v253
  %vm290 = vcmp.eq.s32.totalorder %v226, %v264
  %vm291 = vcmp.eq.s32.totalorder %v225, %v275
  %vm292 = vcmp.eq.s32.totalorder %v225, %v286
  %vm293 = vcmp.eq.s32.totalorder %v226, %v275
  %vm294 = vcmp.eq.s32.totalorder %v226, %v286
  %v295 = vsel %vm287, 1, 0
  %v296 = vsel %vm288, 1, 0
  %v297 = vsel %vm289, 1, 0
  %v298 = vsel %vm290, 1, 0
  %v299 = vsel %vm291, 1, 0
  %v300 = vsel %vm292, 1, 0
  %v301 = vsel %vm293, 1, 0
  %v302 = vsel %vm294, 1, 0
  %v303 = vcvt.s32.f32 %v295
  %v304 = vcvt.s32.f32 %v296
  %v305 = vcvt.s32.f32 %v297
  %v306 = vcvt.s32.f32 %v298
  %v307 = vcvt.s32.f32 %v299
  %v308 = vcvt.s32.f32 %v300
  %v309 = vcvt.s32.f32 %v301
  %v310 = vcvt.s32.f32 %v302
  %v311 = vmul.f32 %v303, %v33
  %v312 = vmul.f32 %v304, %v33
  %v313 = vmul.f32 %v305, %v38
  %v314 = vmul.f32 %v306, %v38
  %v315 = vmul.f32 %v307, %v33
  %v316 = vmul.f32 %v308, %v33
  %v317 = vmul.f32 %v309, %v38
  %v318 = vmul.f32 %v310, %v38
  %v319 = vadd.f32 %v311, %v313
  %v320 = vrot.slane %v319, 4
  %v321 = vadd.f32 %v319, %v320
  %v322 = vrot.slane %v321, 2
  %v323 = vadd.f32 %v321, %v322
  %v324 = vrot.slane %v323, 1
  %v325 = vadd.f32 %v323, %v324
  %v326 = vadd.f32 %v312, %v314
  %v327 = vrot.slane %v326, 4
  %v328 = vadd.f32 %v326, %v327
  %v329 = vrot.slane %v328, 2
  %v330 = vadd.f32 %v328, %v329
  %v331 = vrot.slane %v330, 1
  %v332 = vadd.f32 %v330, %v331
  %v333 = vadd.f32 %v315, %v317
  %v334 = vrot.slane %v333, 4
  %v335 = vadd.f32 %v333, %v334
  %v336 = vrot.slane %v335, 2
  %v337 = vadd.f32 %v335, %v336
  %v338 = vrot.slane %v337, 1
  %v339 = vadd.f32 %v337, %v338
  %v340 = vadd.f32 %v316, %v318
  %v341 = vrot.slane %v340, 4
  %v342 = vadd.f32 %v340, %v341
  %v343 = vrot.slane %v342, 2
  %v344 = vadd.f32 %v342, %v343
  %v345 = vrot.slane %v344, 1
  %v346 = vadd.f32 %v344, %v345
  %v347 = vmul.f32 %v303, %v64
  %v348 = vmul.f32 %v304, %v64
  %v349 = vmul.f32 %v305, %v68
  %v350 = vmul.f32 %v306, %v68
  %v351 = vmul.f32 %v307, %v64
  %v352 = vmul.f32 %v308, %v64
  %v353 = vmul.f32 %v309, %v68
  %v354 = vmul.f32 %v310, %v68
  %v355 = vadd.f32 %v347, %v349
  %v356 = vrot.slane %v355, 4
  %v357 = vadd.f32 %v355, %v356
  %v358 = vrot.slane %v357, 2
  %v359 = vadd.f32 %v357, %v358
  %v360 = vrot.slane %v359, 1
  %v361 = vadd.f32 %v359, %v360
  %v362 = vadd.f32 %v348, %v350
  %v363 = vrot.slane %v362, 4
  %v364 = vadd.f32 %v362, %v363
  %v365 = vrot.slane %v364, 2
  %v366 = vadd.f32 %v364, %v365
  %v367 = vrot.slane %v366, 1
  %v368 = vadd.f32 %v366, %v367
  %v369 = vadd.f32 %v351, %v353
  %v370 = vrot.slane %v369, 4
  %v371 = vadd.f32 %v369, %v370
  %v372 = vrot.slane %v371, 2
  %v373 = vadd.f32 %v371, %v372
  %v374 = vrot.slane %v373, 1
  %v375 = vadd.f32 %v373, %v374
  %v376 = vadd.f32 %v352, %v354
  %v377 = vrot.slane %v376, 4
  %v378 = vadd.f32 %v376, %v377
  %v379 = vrot.slane %v378, 2
  %v380 = vadd.f32 %v378, %v379
  %v381 = vrot.slane %v380, 1
  %v382 = vadd.f32 %v380, %v381
  %v383 = vmul.f32 %v303, %v100
  %v384 = vmul.f32 %v304, %v100
  %v385 = vmul.f32 %v305, %v104
  %v386 = vmul.f32 %v306, %v104
  %v387 = vmul.f32 %v307, %v100
  %v388 = vmul.f32 %v308, %v100
  %v389 = vmul.f32 %v309, %v104
  %v390 = vmul.f32 %v310, %v104
  %v391 = vadd.f32 %v383, %v385
  %v392 = vrot.slane %v391, 4
  %v393 = vadd.f32 %v391, %v392
  %v394 = vrot.slane %v393, 2
  %v395 = vadd.f32 %v393, %v394
  %v396 = vrot.slane %v395, 1
  %v397 = vadd.f32 %v395, %v396
  %v398 = vadd.f32 %v384, %v386
  %v399 = vrot.slane %v398, 4
  %v400 = vadd.f32 %v398, %v399
  %v401 = vrot.slane %v400, 2
  %v402 = vadd.f32 %v400, %v401
  %v403 = vrot.slane %v402, 1
  %v404 = vadd.f32 %v402, %v403
  %v405 = vadd.f32 %v387, %v389
  %v406 = vrot.slane %v405, 4
  %v407 = vadd.f32 %v405, %v406
  %v408 = vrot.slane %v407, 2
  %v409 = vadd.f32 %v407, %v408
  %v410 = vrot.slane %v409, 1
  %v411 = vadd.f32 %v409, %v410
  %v412 = vadd.f32 %v388, %v390
  %v413 = vrot.slane %v412, 4
  %v414 = vadd.f32 %v412, %v413
  %v415 = vrot.slane %v414, 2
  %v416 = vadd.f32 %v414, %v415
  %v417 = vrot.slane %v416, 1
  %v418 = vadd.f32 %v416, %v417
  %v419 = vmul.f32 %v303, %v136
  %v420 = vmul.f32 %v304, %v136
  %v421 = vmul.f32 %v305, %v140
  %v422 = vmul.f32 %v306, %v140
  %v423 = vmul.f32 %v307, %v136
  %v424 = vmul.f32 %v308, %v136
  %v425 = vmul.f32 %v309, %v140
  %v426 = vmul.f32 %v310, %v140
  %v427 = vadd.f32 %v419, %v421
  %v428 = vrot.slane %v427, 4
  %v429 = vadd.f32 %v427, %v428
  %v430 = vrot.slane %v429, 2
  %v431 = vadd.f32 %v429, %v430
  %v432 = vrot.slane %v431, 1
  %v433 = vadd.f32 %v431, %v432
  %v434 = vadd.f32 %v420, %v422
  %v435 = vrot.slane %v434, 4
  %v436 = vadd.f32 %v434, %v435
  %v437 = vrot.slane %v436, 2
  %v438 = vadd.f32 %v436, %v437
  %v439 = vrot.slane %v438, 1
  %v440 = vadd.f32 %v438, %v439
  %v441 = vadd.f32 %v423, %v425
  %v442 = vrot.slane %v441, 4
  %v443 = vadd.f32 %v441, %v442
  %v444 = vrot.slane %v443, 2
  %v445 = vadd.f32 %v443, %v444
  %v446 = vrot.slane %v445, 1
  %v447 = vadd.f32 %v445, %v446
  %v448 = vadd.f32 %v424, %v426
  %v449 = vrot.slane %v448, 4
  %v450 = vadd.f32 %v448, %v449
  %v451 = vrot.slane %v450, 2
  %v452 = vadd.f32 %v450, %v451
  %v453 = vrot.slane %v452, 1
  %v454 = vadd.f32 %v452, %v453
  %vm455 = vcmask 1040384
  %v456 = vsel %vm455, %v325, %v361
  %v457 = vsel %vm455, %v332, %v368
  %v458 = vsel %vm455, %v339, %v375
  %v459 = vsel %vm455, %v346, %v382
  %vm460 = vcmask 1041408
  %v461 = vsel %vm460, %v456, %v397
  %v462 = vsel %vm460, %v457, %v404
  %v463 = vsel %vm460, %v458, %v411
  %v464 = vsel %vm460, %v459, %v418
  %vm465 = vcmask 1042432
  %v466 = vsel %vm465, %v461, %v433
  %v467 = vsel %vm465, %v462, %v440
  %v468 = vsel %vm465, %v463, %v447
  %v469 = vsel %vm465, %v464, %v454
  %v474 = vrot.slane %v467, 4
  %v475 = vrot.slane %v469, 4
  %vm476 = vcmask 1043456
  %v477 = vsel %vm476, %v466, %v474
  %v478 = vsel %vm476, %v468, %v475
  %481 = vst [vmem:[%s3] sm:$0xff] %v477
  %482 = vst [vmem:[%s3 + $0x8] sm:$0xff] %v478
  %v483 = vld [vmem:[#allocation2] sm:$0xff]
  %v484 = vld [vmem:[#allocation2 + $0x8] sm:$0xff]
  %v485 = vld [vmem:[#allocation2 + $0x10] sm:$0xff]
  %v486 = vld [vmem:[#allocation2 + $0x18] sm:$0xff]
  %v487 = vadd.f32 %v303, %v307
  %v488 = vadd.f32 %v304, %v308
  %v489 = vadd.f32 %v305, %v309
  %v490 = vadd.f32 %v306, %v310
  %v491 = vadd.f32 %v483, %v487
  %v492 = vadd.f32 %v484, %v488
  %v493 = vadd.f32 %v485, %v489
  %v494 = vadd.f32 %v486, %v490
  %495 = vst [vmem:[#allocation2] sm:$0xff] %v491
  %496 = vst [vmem:[#allocation2 + $0x8] sm:$0xff] %v492
  %497 = vst [vmem:[#allocation2 + $0x10] sm:$0xff] %v493
  %498 = vst [vmem:[#allocation2 + $0x18] sm:$0xff] %v494
  // Predicated region
  $region18: #{vq_ema_forward.1} parent=0 // pred_check
    %p499 = pneg %p16
  $region19: #{vq_ema_forward.1} parent=0 // pred_check_branch
    %501 = sbr.rel (%p499) target = $region21
  $region20: #{vq_ema_forward.1} parent=0 // pred_region
    %v502 = vld [vmem:[#allocation2] sm:$0xff]
    %v503 = vld [vmem:[#allocation2 + $0x8] sm:$0xff]
    %v504 = vld [vmem:[#allocation2 + $0x10] sm:$0xff]
    %v505 = vld [vmem:[#allocation2 + $0x18] sm:$0xff]
    %v506 = vadd.f32 %v502, %v503
    %507 = vadd.xlane.f32.xlu0 %v506
    %v508 = vpop.xlane.xlu0 %507
    %v509 = vadd.f32 %v504, %v505
    %510 = vadd.xlane.f32.xlu0 %v509
    %v511 = vpop.xlane.xlu0 %510
    %vm512 = vcmask 7168
    %513 = vst.msk [vmem:[%s4] sm:$0xff] %vm512, %v508
    %514 = vst.msk [vmem:[%s4 + $0x8] sm:$0xff] %vm512, %v511
  $region21: #{vq_ema_forward.1} parent=0 // pred_fallthru
    _
  // Predicated region
  $region22: #{vq_ema_forward.1} parent=0 // pred_check
    _
  $region23: #{vq_ema_forward.1} parent=0 // pred_check_branch
    %516 = sbr.rel (0) target = $region25
  $region24: #{vq_ema_forward.1} parent=0 // pred_region
    _
  $region25: #{vq_ema_forward.1} parent=0 // pred_fallthru
    _
  // Predicated region
  $region26: #{vq_ema_forward.1} parent=0 // pred_check
    _
  $region27: #{vq_ema_forward.1} parent=0 // pred_check_branch
    %518 = sbr.rel (0) target = $region29
  $region28: #{vq_ema_forward.1} parent=0 // pred_region
    _
  $region29: #{vq_ema_forward.1} parent=0 // pred_fallthru
    _
  // Predicated region
  $region30: #{vq_ema_forward.1} parent=0 // pred_check
    _
  $region31: #{vq_ema_forward.1} parent=0 // pred_check_branch
    %520 = sbr.rel (0) target = $region33
  $region32: #{vq_ema_forward.1} parent=0 // pred_region
    _
  $region33: #{vq_ema_forward.1} parent=0 // pred_fallthru
    _
  // Predicated region
  $region34: #{vq_ema_forward.1} parent=0 // pred_check
    _
  $region35: #{vq_ema_forward.1} parent=0 // pred_check_branch
    %522 = sbr.rel (0) target = $region37
  $region36: #{vq_ema_forward.1} parent=0 // pred_region
    _
  $region37: #{vq_ema_forward.1} parent=0 // pred_fallthru
    _

</llo_original>
